<compile_context>
chip_gen: v6e
topology: v6e:2x2x1
jax: 0.10.0
libtpu: 0.0.40
codegen_flags: <defaults>
</compile_context>

<pallas_src>
import jax
import jax.numpy as jnp
from jax.experimental import pallas as pl
from jax.experimental.pallas import tpu as pltpu


def encoder_kernel(x_ref, w1_ref, w2_ref, w3_ref, w4_ref, c_ref, o_ref):
    """Fused 4-layer MLP (BN folded into W/c) + LeakyReLU(0.1) + row L2 normalize."""
    d2 = w3_ref.shape[1]  # hidden_size // 2 (static)

    def layer(h, w_ref, c_row, act):
        # bf16 MXU operands, f32 accumulation; elementwise epilogue in f32.
        h = jnp.dot(h.astype(jnp.bfloat16), w_ref[...],
                    preferred_element_type=jnp.float32)
        h = h + c_row
        if act:
            h = jnp.maximum(h, 0.1 * h)  # LeakyReLU(0.1)
        return h

    h = x_ref[...]                                     # (tm, input_size) f32
    h = layer(h, w1_ref, c_ref[0:1, :], act=True)      # fc1 + bn1 + lrelu
    h = layer(h, w2_ref, c_ref[1:2, :], act=True)      # fc2 + bn2 + lrelu
    h = layer(h, w3_ref, c_ref[2:3, 0:d2], act=True)   # fc3 + bn3 + lrelu
    h = layer(h, w4_ref, c_ref[3:4, 0:d2], act=False)  # fc4 + bn4

    # F.normalize(x, p=2, dim=1): x / max(||x||_2, 1e-12) == x * rsqrt(max(sumsq, 1e-24))
    sumsq = jnp.sum(h * h, axis=1, keepdims=True)
    o_ref[...] = h * jax.lax.rsqrt(jnp.maximum(sumsq, 1e-24))


def _round_up(n, m):
    return ((n + m - 1) // m) * m


def enhanced_encoder(x, params, *, tm=512):
    """x: (N, input_size) float32; params: dict with bf16 folded weights w1..w4 and f32 c1..c4."""
    N, din = x.shape
    w1, w2, w3, w4 = params["w1"], params["w2"], params["w3"], params["w4"]
    d_hidden = w1.shape[1]
    d_out = w4.shape[1]

    # Pack the 4 folded bias rows into one (4, d_hidden) f32 ref (rows 3/4 zero-padded).
    def pad_row(c):
        return jnp.pad(c, ((0, 0), (0, d_hidden - c.shape[1])))
    c_packed = jnp.concatenate([pad_row(params[f"c{i}"]) for i in range(1, 5)], axis=0)

    # Batch tile: multiple of 8 sublanes, capped so VMEM stays small (safe on v7x's 64 MiB).
    tm = min(tm, _round_up(N, 8))
    n_pad = _round_up(N, tm)
    if n_pad != N:
        x = jnp.pad(x, ((0, n_pad - N), (0, 0)))
    grid = (n_pad // tm,)

    def resident(a):
        # Same block index every grid step -> fetched once, stays VMEM-resident.
        return pl.BlockSpec(a.shape, lambda i: (0, 0))

    out = pl.pallas_call(
        encoder_kernel,
        out_shape=jax.ShapeDtypeStruct((n_pad, d_out), jnp.float32),
        grid_spec=pltpu.PrefetchScalarGridSpec(
            num_scalar_prefetch=0,
            grid=grid,
            in_specs=[
                pl.BlockSpec((tm, din), lambda i: (i, 0)),  # streamed x tile
                resident(w1), resident(w2), resident(w3), resident(w4),
                resident(c_packed),
            ],
            out_specs=pl.BlockSpec((tm, d_out), lambda i: (i, 0)),
        ),
        compiler_params=pltpu.CompilerParams(
            dimension_semantics=("parallel",)),
    )(x, w1, w2, w3, w4, c_packed)
    return out[:N]


def make_params(key, input_size, hidden_size, eps=1e-5):
    """Deterministic synthetic PyTorch-style parameters with BN folded into the linears."""
    dims = [
        (input_size, hidden_size),             # fc1
        (hidden_size, hidden_size),            # fc2
        (hidden_size, hidden_size // 2),       # fc3
        (hidden_size // 2, hidden_size // 2),  # fc4
    ]
    params = {}
    for i, (din, dout) in enumerate(dims, start=1):
        key, kw, kb, kg, kbe, km, kv = jax.random.split(key, 7)
        # Linear: PyTorch weight shape (dout, din), bias (dout,)
        w = jax.random.normal(kw, (dout, din), jnp.float32) * (1.0 / jnp.sqrt(din))
        b = jax.random.normal(kb, (dout,), jnp.float32) * 0.01
        # BatchNorm1d affine params / running stats (deterministic synthetic).
        gamma = 1.0 + 0.1 * jax.random.normal(kg, (dout,), jnp.float32)
        beta = 0.1 * jax.random.normal(kbe, (dout,), jnp.float32)
        r_mean = 0.1 * jax.random.normal(km, (dout,), jnp.float32)
        r_var = 1.0 + 0.1 * jax.nn.softplus(jax.random.normal(kv, (dout,), jnp.float32))
        scale = gamma / jnp.sqrt(r_var + eps)
        # Fold BN:  bn(linear(x)) = x @ (W^T * scale) + ((b - mean) * scale + beta)
        params[f"w{i}"] = (w.T * scale[None, :]).astype(jnp.bfloat16)        # (din, dout) bf16
        params[f"c{i}"] = ((b - r_mean) * scale + beta).reshape(1, dout)     # (1, dout) f32
    return params


def reference_forward(x, params):
    """Pure-JAX reference using the same bf16-operand / f32-accumulate math."""
    h = x
    for i in range(1, 5):
        h = jnp.dot(h.astype(jnp.bfloat16), params[f"w{i}"],
                    preferred_element_type=jnp.float32) + params[f"c{i}"]
        if i < 4:
            h = jnp.maximum(h, 0.1 * h)
    sumsq = jnp.sum(h * h, axis=1, keepdims=True)
    return h * jax.lax.rsqrt(jnp.maximum(sumsq, 1e-24))


if __name__ == "__main__":
    input_size = 112
    hidden_size = 256
    batch = 16

    key = jax.random.PRNGKey(0)
    kx, kp = jax.random.split(key)
    x = jax.random.normal(kx, (batch, input_size), jnp.float32)
    params = make_params(kp, input_size, hidden_size)

    out = jax.block_until_ready(enhanced_encoder(x, params))
    ref = reference_forward(x, params)

    assert out.shape == (batch, hidden_size // 2)
    assert bool(jnp.all(jnp.isfinite(out)))
    assert jnp.allclose(out, ref, atol=5e-3, rtol=5e-3), "mismatch vs reference"

    print("KERNEL_OK")
</pallas_src>

<mosaic_0001>
module attributes {stable_mosaic.version = 11 : i64} {
  func.func @encoder_kernel(%arg0: i32, %arg1: memref<16x112xf32, #tpu.memory_space<vmem>>, %arg2: memref<112x256xbf16, #tpu.memory_space<vmem>>, %arg3: memref<256x256xbf16, #tpu.memory_space<vmem>>, %arg4: memref<256x128xbf16, #tpu.memory_space<vmem>>, %arg5: memref<128x128xbf16, #tpu.memory_space<vmem>>, %arg6: memref<4x256xf32, #tpu.memory_space<vmem>>, %arg7: memref<16x128xf32, #tpu.memory_space<vmem>>) attributes {dimension_semantics = [#tpu.dimension_semantics<parallel>], iteration_bounds = array<i64: 1>, scalar_prefetch = 0 : i64, scratch_operands = 0 : i64, tpu.core_type = #tpu.core_type<tc>, window_params = [{transform_indices = @transform_0, window_bounds = array<i64: 16, 112>}, {pipeline_mode = #tpu.pipeline_mode<synchronous>, transform_indices = @transform_1, window_bounds = array<i64: 112, 256>}, {pipeline_mode = #tpu.pipeline_mode<synchronous>, transform_indices = @transform_2, window_bounds = array<i64: 256, 256>}, {pipeline_mode = #tpu.pipeline_mode<synchronous>, transform_indices = @transform_3, window_bounds = array<i64: 256, 128>}, {pipeline_mode = #tpu.pipeline_mode<synchronous>, transform_indices = @transform_4, window_bounds = array<i64: 128, 128>}, {pipeline_mode = #tpu.pipeline_mode<synchronous>, transform_indices = @transform_5, window_bounds = array<i64: 4, 256>}, {transform_indices = @transform_6, window_bounds = array<i64: 16, 128>}]} {
    %c0 = arith.constant 0 : index
    %c0_0 = arith.constant 0 : index
    %0 = vector.load %arg1[%c0, %c0_0] : memref<16x112xf32, #tpu.memory_space<vmem>>, vector<16x112xf32>
    %c0_1 = arith.constant 0 : index
    %c0_2 = arith.constant 0 : index
    %1 = vector.load %arg6[%c0_1, %c0_2] : memref<4x256xf32, #tpu.memory_space<vmem>>, vector<1x256xf32>
    %2 = arith.truncf %0 : vector<16x112xf32> to vector<16x112xbf16>
    %c0_3 = arith.constant 0 : index
    %c0_4 = arith.constant 0 : index
    %3 = vector.load %arg2[%c0_3, %c0_4] : memref<112x256xbf16, #tpu.memory_space<vmem>>, vector<112x256xbf16>
    %cst = arith.constant dense<0.000000e+00> : vector<16x256xf32>
    %4 = tpu.matmul %2, %3, %cst {dimension_numbers = #tpu.dot_dimension_numbers<[1], [0], [0], [1], [0, 0, 1, 1], [], []>} : vector<16x112xbf16>, vector<112x256xbf16>, vector<16x256xf32> -> vector<16x256xf32>
    %5 = vector.broadcast %1 : vector<1x256xf32> to vector<16x256xf32>
    %6 = arith.addf %4, %5 : vector<16x256xf32>
    %cst_5 = arith.constant 1.000000e-01 : f32
    %7 = vector.broadcast %cst_5 : f32 to vector<16x256xf32>
    %8 = arith.mulf %7, %6 : vector<16x256xf32>
    %9 = arith.maximumf %6, %8 : vector<16x256xf32>
    %c1 = arith.constant 1 : index
    %c0_6 = arith.constant 0 : index
    %10 = vector.load %arg6[%c1, %c0_6] : memref<4x256xf32, #tpu.memory_space<vmem>>, vector<1x256xf32>
    %11 = arith.truncf %9 : vector<16x256xf32> to vector<16x256xbf16>
    %c0_7 = arith.constant 0 : index
    %c0_8 = arith.constant 0 : index
    %12 = vector.load %arg3[%c0_7, %c0_8] : memref<256x256xbf16, #tpu.memory_space<vmem>>, vector<256x256xbf16>
    %cst_9 = arith.constant dense<0.000000e+00> : vector<16x256xf32>
    %13 = tpu.matmul %11, %12, %cst_9 {dimension_numbers = #tpu.dot_dimension_numbers<[1], [0], [0], [1], [0, 0, 1, 1], [], []>} : vector<16x256xbf16>, vector<256x256xbf16>, vector<16x256xf32> -> vector<16x256xf32>
    %14 = vector.broadcast %10 : vector<1x256xf32> to vector<16x256xf32>
    %15 = arith.addf %13, %14 : vector<16x256xf32>
    %cst_10 = arith.constant 1.000000e-01 : f32
    %16 = vector.broadcast %cst_10 : f32 to vector<16x256xf32>
    %17 = arith.mulf %16, %15 : vector<16x256xf32>
    %18 = arith.maximumf %15, %17 : vector<16x256xf32>
    %c2 = arith.constant 2 : index
    %c0_11 = arith.constant 0 : index
    %19 = vector.load %arg6[%c2, %c0_11] : memref<4x256xf32, #tpu.memory_space<vmem>>, vector<1x128xf32>
    %20 = arith.truncf %18 : vector<16x256xf32> to vector<16x256xbf16>
    %c0_12 = arith.constant 0 : index
    %c0_13 = arith.constant 0 : index
    %21 = vector.load %arg4[%c0_12, %c0_13] : memref<256x128xbf16, #tpu.memory_space<vmem>>, vector<256x128xbf16>
    %cst_14 = arith.constant dense<0.000000e+00> : vector<16x128xf32>
    %22 = tpu.matmul %20, %21, %cst_14 {dimension_numbers = #tpu.dot_dimension_numbers<[1], [0], [0], [1], [0, 0, 1, 1], [], []>} : vector<16x256xbf16>, vector<256x128xbf16>, vector<16x128xf32> -> vector<16x128xf32>
    %23 = vector.broadcast %19 : vector<1x128xf32> to vector<16x128xf32>
    %24 = arith.addf %22, %23 : vector<16x128xf32>
    %cst_15 = arith.constant 1.000000e-01 : f32
    %25 = vector.broadcast %cst_15 : f32 to vector<16x128xf32>
    %26 = arith.mulf %25, %24 : vector<16x128xf32>
    %27 = arith.maximumf %24, %26 : vector<16x128xf32>
    %c3 = arith.constant 3 : index
    %c0_16 = arith.constant 0 : index
    %28 = vector.load %arg6[%c3, %c0_16] : memref<4x256xf32, #tpu.memory_space<vmem>>, vector<1x128xf32>
    %29 = arith.truncf %27 : vector<16x128xf32> to vector<16x128xbf16>
    %c0_17 = arith.constant 0 : index
    %c0_18 = arith.constant 0 : index
    %30 = vector.load %arg5[%c0_17, %c0_18] : memref<128x128xbf16, #tpu.memory_space<vmem>>, vector<128x128xbf16>
    %cst_19 = arith.constant dense<0.000000e+00> : vector<16x128xf32>
    %31 = tpu.matmul %29, %30, %cst_19 {dimension_numbers = #tpu.dot_dimension_numbers<[1], [0], [0], [1], [0, 0, 1, 1], [], []>} : vector<16x128xbf16>, vector<128x128xbf16>, vector<16x128xf32> -> vector<16x128xf32>
    %32 = vector.broadcast %28 : vector<1x128xf32> to vector<16x128xf32>
    %33 = arith.addf %31, %32 : vector<16x128xf32>
    %34 = arith.mulf %33, %33 : vector<16x128xf32>
    %cst_20 = arith.constant dense<0.000000e+00> : vector<16xf32>
    %35 = vector.multi_reduction <add>, %34, %cst_20 [1] : vector<16x128xf32> to vector<16xf32>
    %36 = vector.shape_cast %35 : vector<16xf32> to vector<16x1xf32>
    %cst_21 = arith.constant 1.000000e-24 : f32
    %37 = vector.broadcast %cst_21 : f32 to vector<16x1xf32>
    %38 = arith.maximumf %36, %37 : vector<16x1xf32>
    %39 = math.rsqrt %38 : vector<16x1xf32>
    %40 = vector.broadcast %39 : vector<16x1xf32> to vector<16x128xf32>
    %41 = arith.mulf %33, %40 : vector<16x128xf32>
    %c0_22 = arith.constant 0 : index
    %c0_23 = arith.constant 0 : index
    %42 = vector.load %arg7[%c0_22, %c0_23] : memref<16x128xf32, #tpu.memory_space<vmem>>, vector<16x128xf32>
    tpu.vector_store %arg7[%c0_22, %c0_23], %41 {strides = array<i32>} : memref<16x128xf32, #tpu.memory_space<vmem>>, vector<16x128xf32>,
    return
  }
  func.func @transform_0(%arg0: i32) -> (i32, i32) {
    %c0_i32 = arith.constant 0 : i32
    %c0_i32_0 = arith.constant 0 : i32
    return %arg0, %c0_i32 : i32, i32
  }
  func.func @transform_1(%arg0: i32) -> (i32, i32) {
    %c0_i32 = arith.constant 0 : i32
    %c0_i32_0 = arith.constant 0 : i32
    %c0_i32_1 = arith.constant 0 : i32
    return %c0_i32, %c0_i32_0 : i32, i32
  }
  func.func @transform_2(%arg0: i32) -> (i32, i32) {
    %c0_i32 = arith.constant 0 : i32
    %c0_i32_0 = arith.constant 0 : i32
    %c0_i32_1 = arith.constant 0 : i32
    return %c0_i32, %c0_i32_0 : i32, i32
  }
  func.func @transform_3(%arg0: i32) -> (i32, i32) {
    %c0_i32 = arith.constant 0 : i32
    %c0_i32_0 = arith.constant 0 : i32
    %c0_i32_1 = arith.constant 0 : i32
    return %c0_i32, %c0_i32_0 : i32, i32
  }
  func.func @transform_4(%arg0: i32) -> (i32, i32) {
    %c0_i32 = arith.constant 0 : i32
    %c0_i32_0 = arith.constant 0 : i32
    %c0_i32_1 = arith.constant 0 : i32
    return %c0_i32, %c0_i32_0 : i32, i32
  }
  func.func @transform_5(%arg0: i32) -> (i32, i32) {
    %c0_i32 = arith.constant 0 : i32
    %c0_i32_0 = arith.constant 0 : i32
    %c0_i32_1 = arith.constant 0 : i32
    return %c0_i32, %c0_i32_0 : i32, i32
  }
  func.func @transform_6(%arg0: i32) -> (i32, i32) {
    %c0_i32 = arith.constant 0 : i32
    %c0_i32_0 = arith.constant 0 : i32
    return %arg0, %c0_i32 : i32, i32
  }
}

</mosaic_0001>

<llo_original>
// kernel: tpu_custom_call.1
$region0: #{tpu_custom_call.1}
  #allocation0 [shape = 'u32[]', space=smem, size = 0x4, offset = 0x4, fixed_abs, tag = 'smem constant byte address 0x4 - core index']
  #allocation1 [shape = 'u32[144,128]{1,0:T(1,128)}', space=vmem, size = 0x12000, scoped, tag = 'internal scratch']
  %s0 = inlined_call_operand.hbm [shape: f32[16,112], index: 0, kind: input, shape index: {}]
  %s1 = inlined_call_operand.hbm [shape: bf16[112,256], index: 1, kind: input, shape index: {}]
  %s2 = inlined_call_operand.hbm [shape: bf16[256,256], index: 2, kind: input, shape index: {}]
  %s3 = inlined_call_operand.hbm [shape: bf16[256,128], index: 3, kind: input, shape index: {}]
  %s4 = inlined_call_operand.hbm [shape: bf16[128,128], index: 4, kind: input, shape index: {}]
  %s5 = inlined_call_operand.vmem [shape: f32[4,256], index: 5, kind: input, shape index: {}]
  %s6 = inlined_call_operand.hbm [shape: f32[16,128], index: 6, kind: output, shape index: {}]
  %s7 = sld [smem:[#allocation0]]
  $region54: #{tpu_custom_call.1} parent=0
    _
  %s9 = ssub.s32 1, %s7
  %s10 = scalar_select 0, %s9, %s7
  $region1: #{tpu_custom_call.1} parent=0
    #allocation2 [shape = 'u8[8192]{0}', space=vmem, size = 0x2000, scoped, tag = 'input window, operand 0, single buffered']
    #allocation3 [shape = 's32[1]{0}', space=sflag, size = 0x4, scoped, tag = 'scoped memory for tpu_custom_call.1']
    #allocation4 [shape = 's32[1]{0}', space=sflag, size = 0x4, scoped, tag = 'scoped memory for tpu_custom_call.1']
    #allocation5 [shape = 'u8[57344]{0}', space=vmem, size = 0xe000, scoped, tag = 'input window, operand 1, single buffered']
    #allocation6 [shape = 's32[1]{0}', space=sflag, size = 0x4, scoped, tag = 'scoped memory for tpu_custom_call.1']
    #allocation7 [shape = 'u8[131072]{0}', space=vmem, size = 0x20000, scoped, tag = 'input window, operand 2, single buffered']
    #allocation8 [shape = 'u8[65536]{0}', space=vmem, size = 0x10000, scoped, tag = 'input window, operand 3, single buffered']
    #allocation9 [shape = 's32[1]{0}', space=sflag, size = 0x4, scoped, tag = 'scoped memory for tpu_custom_call.1']
    #allocation10 [shape = 'u8[32768]{0}', space=vmem, size = 0x8000, scoped, tag = 'input window, operand 4, single buffered']
    #allocation11 [shape = 'u8[8192]{0}', space=vmem, size = 0x2000, scoped, tag = 'output window, operand 0, single buffered']
    %11 = vsyncpa [#allocation3], 0
    %12 = vsyncpa [#allocation6], 0
    %13 = vsyncpa [#allocation9], 0
    %14 = vsyncpa [#allocation4], 0
    // Predicated region
    $region2: #{tpu_custom_call.1} parent=1 // pred_check
      _
    $region3: #{tpu_custom_call.1} parent=1 // pred_check_branch
      %16 = sbr.rel (0) target = $region5
    $region4: #{tpu_custom_call.1} parent=1 // pred_region
      %s18 = ssub.s32 256, 256
      %19 = vsyncadd [#allocation3], %s18
      %s20 = sshll.u32 [#allocation2], 4
      %s21 = int_to_ptr.vmem [resolvable:$true] %s20
      %26 = dma.hbm_to_vmem [thread:$0]  %s0, 256, %s21, [#allocation3], 128, 128, 8
    $region5: #{tpu_custom_call.1} parent=1 // pred_fallthru
      _
    // Predicated region
    $region6: #{tpu_custom_call.1} parent=1 // pred_check
      _
    $region7: #{tpu_custom_call.1} parent=1 // pred_check_branch
      %28 = sbr.rel (0) target = $region9
    $region8: #{tpu_custom_call.1} parent=1 // pred_region
      %s30 = ssub.s32 1792, 1792
      %31 = vsyncadd [#allocation6], %s30
      %s32 = sshll.u32 [#allocation5], 4
      %s33 = int_to_ptr.vmem [resolvable:$true] %s32
      %38 = dma.hbm_to_vmem [thread:$0]  %s1, 1792, %s33, [#allocation6], 128, 128, 8
    $region9: #{tpu_custom_call.1} parent=1 // pred_fallthru
      _
    // Predicated region
    $region10: #{tpu_custom_call.1} parent=1 // pred_check
      _
    $region11: #{tpu_custom_call.1} parent=1 // pred_check_branch
      %40 = sbr.rel (0) target = $region13
    $region12: #{tpu_custom_call.1} parent=1 // pred_region
      %s42 = ssub.s32 4096, 4096
      %43 = vsyncadd [#allocation6], %s42
      %s44 = sshll.u32 [#allocation7], 4
      %s45 = int_to_ptr.vmem [resolvable:$true] %s44
      %50 = dma.hbm_to_vmem [thread:$0]  %s2, 4096, %s45, [#allocation6], 128, 128, 8
    $region13: #{tpu_custom_call.1} parent=1 // pred_fallthru
      _
    // Predicated region
    $region14: #{tpu_custom_call.1} parent=1 // pred_check
      _
    $region15: #{tpu_custom_call.1} parent=1 // pred_check_branch
      %52 = sbr.rel (0) target = $region17
    $region16: #{tpu_custom_call.1} parent=1 // pred_region
      %s54 = ssub.s32 2048, 2048
      %55 = vsyncadd [#allocation9], %s54
      %s56 = sshll.u32 [#allocation8], 4
      %s57 = int_to_ptr.vmem [resolvable:$true] %s56
      %62 = dma.hbm_to_vmem [thread:$0]  %s3, 2048, %s57, [#allocation9], 64, 64, 4
    $region17: #{tpu_custom_call.1} parent=1 // pred_fallthru
      _
    // Predicated region
    $region18: #{tpu_custom_call.1} parent=1 // pred_check
      _
    $region19: #{tpu_custom_call.1} parent=1 // pred_check_branch
      %64 = sbr.rel (0) target = $region21
    $region20: #{tpu_custom_call.1} parent=1 // pred_region
      %s66 = ssub.s32 1024, 1024
      %67 = vsyncadd [#allocation9], %s66
      %s68 = sshll.u32 [#allocation10], 4
      %s69 = int_to_ptr.vmem [resolvable:$true] %s68
      %74 = dma.hbm_to_vmem [thread:$0]  %s4, 1024, %s69, [#allocation9], 64, 64, 4
    $region21: #{tpu_custom_call.1} parent=1 // pred_fallthru
      _
    // Predicated region
    $region22: #{tpu_custom_call.1} parent=1 // pred_check
      _
    $region23: #{tpu_custom_call.1} parent=1 // pred_check_branch
      %76 = sbr.rel (0) target = $region25
    $region24: #{tpu_custom_call.1} parent=1 // pred_region
      _
    $region25: #{tpu_custom_call.1} parent=1 // pred_fallthru
      _
    // Predicated region
    $region26: #{tpu_custom_call.1} parent=1 // pred_check
      _
    $region27: #{tpu_custom_call.1} parent=1 // pred_check_branch
      %78 = sbr.rel (0) target = $region29
    $region28: #{tpu_custom_call.1} parent=1 // pred_region
      %79 = dma.done [#allocation3], 256
    $region29: #{tpu_custom_call.1} parent=1 // pred_fallthru
      _
    // Predicated region
    $region30: #{tpu_custom_call.1} parent=1 // pred_check
      _
    $region31: #{tpu_custom_call.1} parent=1 // pred_check_branch
      %81 = sbr.rel (0) target = $region33
    $region32: #{tpu_custom_call.1} parent=1 // pred_region
      %82 = dma.done [#allocation6], 1792
    $region33: #{tpu_custom_call.1} parent=1 // pred_fallthru
      _
    // Predicated region
    $region34: #{tpu_custom_call.1} parent=1 // pred_check
      _
    $region35: #{tpu_custom_call.1} parent=1 // pred_check_branch
      %84 = sbr.rel (0) target = $region37
    $region36: #{tpu_custom_call.1} parent=1 // pred_region
      %85 = dma.done [#allocation6], 4096
    $region37: #{tpu_custom_call.1} parent=1 // pred_fallthru
      _
    // Predicated region
    $region38: #{tpu_custom_call.1} parent=1 // pred_check
      _
    $region39: #{tpu_custom_call.1} parent=1 // pred_check_branch
      %87 = sbr.rel (0) target = $region41
    $region40: #{tpu_custom_call.1} parent=1 // pred_region
      %88 = dma.done [#allocation9], 2048
    $region41: #{tpu_custom_call.1} parent=1 // pred_fallthru
      _
    // Predicated region
    $region42: #{tpu_custom_call.1} parent=1 // pred_check
      _
    $region43: #{tpu_custom_call.1} parent=1 // pred_check_branch
      %90 = sbr.rel (0) target = $region45
    $region44: #{tpu_custom_call.1} parent=1 // pred_region
      %91 = dma.done [#allocation9], 1024
    $region45: #{tpu_custom_call.1} parent=1 // pred_fallthru
      _
    %v93 = vld [vmem:[#allocation2] sm:$0xff]
    %v94 = vld [vmem:[#allocation2 + $0x8] sm:$0xff]
    %v95 = vld [vmem:[%s5] ss:$4 sm:$0x3]
    %v96 = vpack.c.bf16 %v94, %v93
    %v97 = vld [vmem:[#allocation5] sm:$0xff]
    %v98 = vld [vmem:[#allocation5 + $0x8] sm:$0xff]
    %v99 = vld [vmem:[#allocation5 + $0x10] sm:$0xff]
    %v100 = vld [vmem:[#allocation5 + $0x18] sm:$0xff]
    %v101 = vld [vmem:[#allocation5 + $0x20] sm:$0xff]
    %v102 = vld [vmem:[#allocation5 + $0x28] sm:$0xff]
    %v103 = vld [vmem:[#allocation5 + $0x30] sm:$0xff]
    %v104 = vld [vmem:[#allocation5 + $0x38] sm:$0xff]
    %v105 = vld [vmem:[#allocation5 + $0x40] sm:$0xff]
    %v106 = vld [vmem:[#allocation5 + $0x48] sm:$0xff]
    %v107 = vld [vmem:[#allocation5 + $0x50] sm:$0xff]
    %v108 = vld [vmem:[#allocation5 + $0x58] sm:$0xff]
    %v109 = vld [vmem:[#allocation5 + $0x60] sm:$0xff]
    %v110 = vld [vmem:[#allocation5 + $0x68] sm:$0xff]
    %v112 = vlaneseq
    %v113 = vshrl.u32 %v112, 7
    %v114 = vsub.s32 0, %v113
    %v115 = vrot.slane %v95, %v114
    %v116 = vlaneseq
    %v117 = vshrl.u32 %v116, 7
    %v118 = vsub.s32 1, %v117
    %v119 = vrot.slane %v95, %v118
    %v136 = vunpack.c.l.b16 %v97
    %v137 = vunpack.c.h.b16 %v97
    %v138 = vunpack.c.l.b16 %v98
    %v139 = vunpack.c.h.b16 %v98
    %v140 = vunpack.c.l.b16 %v99
    %v141 = vunpack.c.h.b16 %v99
    %v142 = vunpack.c.l.b16 %v100
    %v143 = vunpack.c.h.b16 %v100
    %v144 = vunpack.c.l.b16 %v101
    %v145 = vunpack.c.h.b16 %v101
    %v146 = vunpack.c.l.b16 %v102
    %v147 = vunpack.c.h.b16 %v102
    %v148 = vunpack.c.l.b16 %v103
    %v149 = vunpack.c.h.b16 %v103
    %v150 = vunpack.c.l.b16 %v104
    %v151 = vunpack.c.h.b16 %v104
    %v152 = vunpack.c.l.b16 %v105
    %v153 = vunpack.c.h.b16 %v105
    %v154 = vunpack.c.l.b16 %v106
    %v155 = vunpack.c.h.b16 %v106
    %v156 = vunpack.c.l.b16 %v107
    %v157 = vunpack.c.h.b16 %v107
    %v158 = vunpack.c.l.b16 %v108
    %v159 = vunpack.c.h.b16 %v108
    %v160 = vunpack.c.l.b16 %v109
    %v161 = vunpack.c.h.b16 %v109
    %v162 = vunpack.c.l.b16 %v110
    %v163 = vunpack.c.h.b16 %v110
    %v164 = vpack.c.b16 %v138, %v136
    %v165 = vpack.c.b16 %v139, %v137
    %v166 = vpack.c.b16 %v142, %v140
    %v167 = vpack.c.b16 %v143, %v141
    %v168 = vpack.c.b16 %v146, %v144
    %v169 = vpack.c.b16 %v147, %v145
    %v170 = vpack.c.b16 %v150, %v148
    %v171 = vpack.c.b16 %v151, %v149
    %v172 = vpack.c.b16 %v154, %v152
    %v173 = vpack.c.b16 %v155, %v153
    %v174 = vpack.c.b16 %v158, %v156
    %v175 = vpack.c.b16 %v159, %v157
    %v176 = vpack.c.b16 %v162, %v160
    %v177 = vpack.c.b16 %v163, %v161
    %vm192 = vcmask 916480
    %v194 = vsel %vm192, %v96, 0
    %196 = vmatprep.subr.bf16.mxu0 0
    %197 = vmatpush1.bf16.msra.mxu0 0
    %198 = vmatprep.subr.bf16.mxu0 %v177
    %199 = vmatpush1.bf16.msra.mxu0 %v176
    %200 = vmatprep.subr.bf16.mxu0 %v175
    %201 = vmatpush1.bf16.msra.mxu0 %v174
    %202 = vmatprep.subr.bf16.mxu0 %v173
    %203 = vmatpush1.bf16.msra.mxu0 %v172
    %204 = vmatprep.subr.bf16.mxu0 %v171
    %205 = vmatpush1.bf16.msra.mxu0 %v170
    %206 = vmatprep.subr.bf16.mxu0 %v169
    %207 = vmatpush1.bf16.msra.mxu0 %v168
    %208 = vmatprep.subr.bf16.mxu0 %v167
    %209 = vmatpush1.bf16.msra.mxu0 %v166
    %210 = vmatprep.subr.bf16.mxu0 %v165
    %211 = vmatpush1.bf16.msra.mxu0 %v164
    %212 = vmatprep.subr.bf16.mxu0 0
    %213 = vmatpush2.bf16.msra.mxu0 0
    %214 = vmatprep.subr.bf16.mxu0 0
    %215 = vmatpush2.bf16.msra.mxu0 0
    %216 = vmatprep.subr.bf16.mxu0 0
    %217 = vmatpush2.bf16.msra.mxu0 0
    %218 = vmatprep.subr.bf16.mxu0 0
    %219 = vmatpush2.bf16.msra.mxu0 0
    %220 = vmatprep.subr.bf16.mxu0 0
    %221 = vmatpush2.bf16.msra.mxu0 0
    %222 = vmatprep.subr.bf16.mxu0 0
    %223 = vmatpush2.bf16.msra.mxu0 0
    %224 = vmatprep.subr.bf16.mxu0 0
    %225 = vmatpush2.bf16.msra.mxu0 0
    %226 = vmatprep.subr.bf16.mxu0 0
    %227 = vmatpush2.bf16.msra.mxu0 0
    %228 = vmatprep.mubr.bf16.mxu0 0
    %229 = vmatmul.mubr.bf16.gmra.mxu0 %v194
    %v230 = vpop.f32.mrf.mxu0
    %v231 = vadd.f32 %v115, %v230
    %v232 = vpop.f32.mrf.mxu0
    %v233 = vadd.f32 %v119, %v232
    %v234 = vpop.f32.mrf.mxu0
    %v235 = vadd.f32 %v115, %v234
    %v236 = vpop.f32.mrf.mxu0
    %v237 = vadd.f32 %v119, %v236
    %238 = vdwg.mxu0
    %v239 = vmul.f32 %v231, 0.1
    %v240 = vmul.f32 %v233, 0.1
    %v241 = vmul.f32 %v235, 0.1
    %v242 = vmul.f32 %v237, 0.1
    %v243 = vmax.f32 %v231, %v239
    %v244 = vmax.f32 %v233, %v240
    %v245 = vmax.f32 %v235, %v241
    %v246 = vmax.f32 %v237, %v242
    %s247 = scalar_lea.vmem %s5, 1
    %v248 = vld [vmem:[%s247] ss:$4 sm:$0x3]
    %v249 = vpack.c.bf16 %v245, %v243
    %v250 = vpack.c.bf16 %v246, %v244
    %v251 = vld [vmem:[#allocation7] sm:$0xff]
    %v252 = vld [vmem:[#allocation7 + $0x8] sm:$0xff]
    %v253 = vld [vmem:[#allocation7 + $0x10] sm:$0xff]
    %v254 = vld [vmem:[#allocation7 + $0x18] sm:$0xff]
    %v255 = vld [vmem:[#allocation7 + $0x20] sm:$0xff]
    %v256 = vld [vmem:[#allocation7 + $0x28] sm:$0xff]
    %v257 = vld [vmem:[#allocation7 + $0x30] sm:$0xff]
    %v258 = vld [vmem:[#allocation7 + $0x38] sm:$0xff]
    %v259 = vld [vmem:[#allocation7 + $0x40] sm:$0xff]
    %v260 = vld [vmem:[#allocation7 + $0x48] sm:$0xff]
    %v261 = vld [vmem:[#allocation7 + $0x50] sm:$0xff]
    %v262 = vld [vmem:[#allocation7 + $0x58] sm:$0xff]
    %v263 = vld [vmem:[#allocation7 + $0x60] sm:$0xff]
    %v264 = vld [vmem:[#allocation7 + $0x68] sm:$0xff]
    %v265 = vld [vmem:[#allocation7 + $0x70] sm:$0xff]
    %v266 = vld [vmem:[#allocation7 + $0x78] sm:$0xff]
    %v267 = vld [vmem:[#allocation7 + $0x80] sm:$0xff]
    %v268 = vld [vmem:[#allocation7 + $0x88] sm:$0xff]
    %v269 = vld [vmem:[#allocation7 + $0x90] sm:$0xff]
    %v270 = vld [vmem:[#allocation7 + $0x98] sm:$0xff]
    %v271 = vld [vmem:[#allocation7 + $0xa0] sm:$0xff]
    %v272 = vld [vmem:[#allocation7 + $0xa8] sm:$0xff]
    %v273 = vld [vmem:[#allocation7 + $0xb0] sm:$0xff]
    %v274 = vld [vmem:[#allocation7 + $0xb8] sm:$0xff]
    %v275 = vld [vmem:[#allocation7 + $0xc0] sm:$0xff]
    %v276 = vld [vmem:[#allocation7 + $0xc8] sm:$0xff]
    %v277 = vld [vmem:[#allocation7 + $0xd0] sm:$0xff]
    %v278 = vld [vmem:[#allocation7 + $0xd8] sm:$0xff]
    %v279 = vld [vmem:[#allocation7 + $0xe0] sm:$0xff]
    %v280 = vld [vmem:[#allocation7 + $0xe8] sm:$0xff]
    %v281 = vld [vmem:[#allocation7 + $0xf0] sm:$0xff]
    %v282 = vld [vmem:[#allocation7 + $0xf8] sm:$0xff]
    %v284 = vlaneseq
    %v285 = vshrl.u32 %v284, 7
    %v286 = vsub.s32 0, %v285
    %v287 = vrot.slane %v248, %v286
    %v288 = vlaneseq
    %v289 = vshrl.u32 %v288, 7
    %v290 = vsub.s32 1, %v289
    %v291 = vrot.slane %v248, %v290
    %v326 = vunpack.c.l.b16 %v251
    %v327 = vunpack.c.h.b16 %v251
    %v328 = vunpack.c.l.b16 %v252
    %v329 = vunpack.c.h.b16 %v252
    %v330 = vunpack.c.l.b16 %v253
    %v331 = vunpack.c.h.b16 %v253
    %v332 = vunpack.c.l.b16 %v254
    %v333 = vunpack.c.h.b16 %v254
    %v334 = vunpack.c.l.b16 %v255
    %v335 = vunpack.c.h.b16 %v255
    %v336 = vunpack.c.l.b16 %v256
    %v337 = vunpack.c.h.b16 %v256
    %v338 = vunpack.c.l.b16 %v257
    %v339 = vunpack.c.h.b16 %v257
    %v340 = vunpack.c.l.b16 %v258
    %v341 = vunpack.c.h.b16 %v258
    %v342 = vunpack.c.l.b16 %v259
    %v343 = vunpack.c.h.b16 %v259
    %v344 = vunpack.c.l.b16 %v260
    %v345 = vunpack.c.h.b16 %v260
    %v346 = vunpack.c.l.b16 %v261
    %v347 = vunpack.c.h.b16 %v261
    %v348 = vunpack.c.l.b16 %v262
    %v349 = vunpack.c.h.b16 %v262
    %v350 = vunpack.c.l.b16 %v263
    %v351 = vunpack.c.h.b16 %v263
    %v352 = vunpack.c.l.b16 %v264
    %v353 = vunpack.c.h.b16 %v264
    %v354 = vunpack.c.l.b16 %v265
    %v355 = vunpack.c.h.b16 %v265
    %v356 = vunpack.c.l.b16 %v266
    %v357 = vunpack.c.h.b16 %v266
    %v358 = vunpack.c.l.b16 %v267
    %v359 = vunpack.c.h.b16 %v267
    %v360 = vunpack.c.l.b16 %v268
    %v361 = vunpack.c.h.b16 %v268
    %v362 = vunpack.c.l.b16 %v269
    %v363 = vunpack.c.h.b16 %v269
    %v364 = vunpack.c.l.b16 %v270
    %v365 = vunpack.c.h.b16 %v270
    %v366 = vunpack.c.l.b16 %v271
    %v367 = vunpack.c.h.b16 %v271
    %v368 = vunpack.c.l.b16 %v272
    %v369 = vunpack.c.h.b16 %v272
    %v370 = vunpack.c.l.b16 %v273
    %v371 = vunpack.c.h.b16 %v273
    %v372 = vunpack.c.l.b16 %v274
    %v373 = vunpack.c.h.b16 %v274
    %v374 = vunpack.c.l.b16 %v275
    %v375 = vunpack.c.h.b16 %v275
    %v376 = vunpack.c.l.b16 %v276
    %v377 = vunpack.c.h.b16 %v276
    %v378 = vunpack.c.l.b16 %v277
    %v379 = vunpack.c.h.b16 %v277
    %v380 = vunpack.c.l.b16 %v278
    %v381 = vunpack.c.h.b16 %v278
    %v382 = vunpack.c.l.b16 %v279
    %v383 = vunpack.c.h.b16 %v279
    %v384 = vunpack.c.l.b16 %v280
    %v385 = vunpack.c.h.b16 %v280
    %v386 = vunpack.c.l.b16 %v281
    %v387 = vunpack.c.h.b16 %v281
    %v388 = vunpack.c.l.b16 %v282
    %v389 = vunpack.c.h.b16 %v282
    %v390 = vpack.c.b16 %v328, %v326
    %v391 = vpack.c.b16 %v329, %v327
    %v392 = vpack.c.b16 %v332, %v330
    %v393 = vpack.c.b16 %v333, %v331
    %v394 = vpack.c.b16 %v336, %v334
    %v395 = vpack.c.b16 %v337, %v335
    %v396 = vpack.c.b16 %v340, %v338
    %v397 = vpack.c.b16 %v341, %v339
    %v398 = vpack.c.b16 %v344, %v342
    %v399 = vpack.c.b16 %v345, %v343
    %v400 = vpack.c.b16 %v348, %v346
    %v401 = vpack.c.b16 %v349, %v347
    %v402 = vpack.c.b16 %v352, %v350
    %v403 = vpack.c.b16 %v353, %v351
    %v404 = vpack.c.b16 %v356, %v354
    %v405 = vpack.c.b16 %v357, %v355
    %v406 = vpack.c.b16 %v360, %v358
    %v407 = vpack.c.b16 %v361, %v359
    %v408 = vpack.c.b16 %v364, %v362
    %v409 = vpack.c.b16 %v365, %v363
    %v410 = vpack.c.b16 %v368, %v366
    %v411 = vpack.c.b16 %v369, %v367
    %v412 = vpack.c.b16 %v372, %v370
    %v413 = vpack.c.b16 %v373, %v371
    %v414 = vpack.c.b16 %v376, %v374
    %v415 = vpack.c.b16 %v377, %v375
    %v416 = vpack.c.b16 %v380, %v378
    %v417 = vpack.c.b16 %v381, %v379
    %v418 = vpack.c.b16 %v384, %v382
    %v419 = vpack.c.b16 %v385, %v383
    %v420 = vpack.c.b16 %v388, %v386
    %v421 = vpack.c.b16 %v389, %v387
    %454 = vmatprep.subr.bf16.mxu0 %v405
    %455 = vmatpush1.bf16.msra.mxu0 %v404
    %456 = vmatprep.subr.bf16.mxu0 %v403
    %457 = vmatpush1.bf16.msra.mxu0 %v402
    %458 = vmatprep.subr.bf16.mxu0 %v401
    %459 = vmatpush1.bf16.msra.mxu0 %v400
    %460 = vmatprep.subr.bf16.mxu0 %v399
    %461 = vmatpush1.bf16.msra.mxu0 %v398
    %462 = vmatprep.subr.bf16.mxu0 %v397
    %463 = vmatpush1.bf16.msra.mxu0 %v396
    %464 = vmatprep.subr.bf16.mxu0 %v395
    %465 = vmatpush1.bf16.msra.mxu0 %v394
    %466 = vmatprep.subr.bf16.mxu0 %v393
    %467 = vmatpush1.bf16.msra.mxu0 %v392
    %468 = vmatprep.subr.bf16.mxu0 %v391
    %469 = vmatpush1.bf16.msra.mxu0 %v390
    %470 = vmatprep.subr.bf16.mxu0 %v421
    %471 = vmatpush2.bf16.msra.mxu0 %v420
    %472 = vmatprep.subr.bf16.mxu0 %v419
    %473 = vmatpush2.bf16.msra.mxu0 %v418
    %474 = vmatprep.subr.bf16.mxu0 %v417
    %475 = vmatpush2.bf16.msra.mxu0 %v416
    %476 = vmatprep.subr.bf16.mxu0 %v415
    %477 = vmatpush2.bf16.msra.mxu0 %v414
    %478 = vmatprep.subr.bf16.mxu0 %v413
    %479 = vmatpush2.bf16.msra.mxu0 %v412
    %480 = vmatprep.subr.bf16.mxu0 %v411
    %481 = vmatpush2.bf16.msra.mxu0 %v410
    %482 = vmatprep.subr.bf16.mxu0 %v409
    %483 = vmatpush2.bf16.msra.mxu0 %v408
    %484 = vmatprep.subr.bf16.mxu0 %v407
    %485 = vmatpush2.bf16.msra.mxu0 %v406
    %486 = vmatprep.mubr.bf16.mxu0 %v250
    %487 = vmatmul.mubr.bf16.gmra.mxu0 %v249
    %v488 = vpop.f32.mrf.mxu0
    %v489 = vadd.f32 %v287, %v488
    %v490 = vpop.f32.mrf.mxu0
    %v491 = vadd.f32 %v291, %v490
    %v492 = vpop.f32.mrf.mxu0
    %v493 = vadd.f32 %v287, %v492
    %v494 = vpop.f32.mrf.mxu0
    %v495 = vadd.f32 %v291, %v494
    %496 = vdwg.mxu0
    %v497 = vmul.f32 %v489, 0.1
    %v498 = vmul.f32 %v491, 0.1
    %v499 = vmul.f32 %v493, 0.1
    %v500 = vmul.f32 %v495, 0.1
    %v501 = vmax.f32 %v489, %v497
    %v502 = vmax.f32 %v491, %v498
    %v503 = vmax.f32 %v493, %v499
    %v504 = vmax.f32 %v495, %v500
    %v505 = vld [vmem:[%s5 + $0x2] sm:$0x1]
    %v506 = vpack.c.bf16 %v503, %v501
    %v507 = vpack.c.bf16 %v504, %v502
    %v508 = vld [vmem:[#allocation8] sm:$0xf]
    %v509 = vld [vmem:[#allocation8 + $0x4] sm:$0xf]
    %v510 = vld [vmem:[#allocation8 + $0x8] sm:$0xf]
    %v511 = vld [vmem:[#allocation8 + $0xc] sm:$0xf]
    %v512 = vld [vmem:[#allocation8 + $0x10] sm:$0xf]
    %v513 = vld [vmem:[#allocation8 + $0x14] sm:$0xf]
    %v514 = vld [vmem:[#allocation8 + $0x18] sm:$0xf]
    %v515 = vld [vmem:[#allocation8 + $0x1c] sm:$0xf]
    %v516 = vld [vmem:[#allocation8 + $0x20] sm:$0xf]
    %v517 = vld [vmem:[#allocation8 + $0x24] sm:$0xf]
    %v518 = vld [vmem:[#allocation8 + $0x28] sm:$0xf]
    %v519 = vld [vmem:[#allocation8 + $0x2c] sm:$0xf]
    %v520 = vld [vmem:[#allocation8 + $0x30] sm:$0xf]
    %v521 = vld [vmem:[#allocation8 + $0x34] sm:$0xf]
    %v522 = vld [vmem:[#allocation8 + $0x38] sm:$0xf]
    %v523 = vld [vmem:[#allocation8 + $0x3c] sm:$0xf]
    %v524 = vld [vmem:[#allocation8 + $0x40] sm:$0xf]
    %v525 = vld [vmem:[#allocation8 + $0x44] sm:$0xf]
    %v526 = vld [vmem:[#allocation8 + $0x48] sm:$0xf]
    %v527 = vld [vmem:[#allocation8 + $0x4c] sm:$0xf]
    %v528 = vld [vmem:[#allocation8 + $0x50] sm:$0xf]
    %v529 = vld [vmem:[#allocation8 + $0x54] sm:$0xf]
    %v530 = vld [vmem:[#allocation8 + $0x58] sm:$0xf]
    %v531 = vld [vmem:[#allocation8 + $0x5c] sm:$0xf]
    %v532 = vld [vmem:[#allocation8 + $0x60] sm:$0xf]
    %v533 = vld [vmem:[#allocation8 + $0x64] sm:$0xf]
    %v534 = vld [vmem:[#allocation8 + $0x68] sm:$0xf]
    %v535 = vld [vmem:[#allocation8 + $0x6c] sm:$0xf]
    %v536 = vld [vmem:[#allocation8 + $0x70] sm:$0xf]
    %v537 = vld [vmem:[#allocation8 + $0x74] sm:$0xf]
    %v538 = vld [vmem:[#allocation8 + $0x78] sm:$0xf]
    %v539 = vld [vmem:[#allocation8 + $0x7c] sm:$0xf]
    %v540 = vlaneseq
    %v541 = vshrl.u32 %v540, 7
    %v542 = vsub.s32 0, %v541
    %v543 = vrot.slane %v505, %v542
    %v576 = vunpack.c.l.b16 %v508
    %v577 = vunpack.c.l.b16 %v509
    %v578 = vunpack.c.l.b16 %v510
    %v579 = vunpack.c.l.b16 %v511
    %v580 = vunpack.c.l.b16 %v512
    %v581 = vunpack.c.l.b16 %v513
    %v582 = vunpack.c.l.b16 %v514
    %v583 = vunpack.c.l.b16 %v515
    %v584 = vunpack.c.l.b16 %v516
    %v585 = vunpack.c.l.b16 %v517
    %v586 = vunpack.c.l.b16 %v518
    %v587 = vunpack.c.l.b16 %v519
    %v588 = vunpack.c.l.b16 %v520
    %v589 = vunpack.c.l.b16 %v521
    %v590 = vunpack.c.l.b16 %v522
    %v591 = vunpack.c.l.b16 %v523
    %v592 = vunpack.c.l.b16 %v524
    %v593 = vunpack.c.l.b16 %v525
    %v594 = vunpack.c.l.b16 %v526
    %v595 = vunpack.c.l.b16 %v527
    %v596 = vunpack.c.l.b16 %v528
    %v597 = vunpack.c.l.b16 %v529
    %v598 = vunpack.c.l.b16 %v530
    %v599 = vunpack.c.l.b16 %v531
    %v600 = vunpack.c.l.b16 %v532
    %v601 = vunpack.c.l.b16 %v533
    %v602 = vunpack.c.l.b16 %v534
    %v603 = vunpack.c.l.b16 %v535
    %v604 = vunpack.c.l.b16 %v536
    %v605 = vunpack.c.l.b16 %v537
    %v606 = vunpack.c.l.b16 %v538
    %v607 = vunpack.c.l.b16 %v539
    %v608 = vpack.c.b16 %v577, %v576
    %v609 = vpack.c.b16 %v579, %v578
    %v610 = vpack.c.b16 %v581, %v580
    %v611 = vpack.c.b16 %v583, %v582
    %v612 = vpack.c.b16 %v585, %v584
    %v613 = vpack.c.b16 %v587, %v586
    %v614 = vpack.c.b16 %v589, %v588
    %v615 = vpack.c.b16 %v591, %v590
    %v616 = vpack.c.b16 %v593, %v592
    %v617 = vpack.c.b16 %v595, %v594
    %v618 = vpack.c.b16 %v597, %v596
    %v619 = vpack.c.b16 %v599, %v598
    %v620 = vpack.c.b16 %v601, %v600
    %v621 = vpack.c.b16 %v603, %v602
    %v622 = vpack.c.b16 %v605, %v604
    %v623 = vpack.c.b16 %v607, %v606
    %640 = vmatprep.subr.bf16.mxu0 0
    %641 = vmatpush1.bf16.msra.mxu0 %v615
    %642 = vmatprep.subr.bf16.mxu0 0
    %643 = vmatpush1.bf16.msra.mxu0 %v614
    %644 = vmatprep.subr.bf16.mxu0 0
    %645 = vmatpush1.bf16.msra.mxu0 %v613
    %646 = vmatprep.subr.bf16.mxu0 0
    %647 = vmatpush1.bf16.msra.mxu0 %v612
    %648 = vmatprep.subr.bf16.mxu0 0
    %649 = vmatpush1.bf16.msra.mxu0 %v611
    %650 = vmatprep.subr.bf16.mxu0 0
    %651 = vmatpush1.bf16.msra.mxu0 %v610
    %652 = vmatprep.subr.bf16.mxu0 0
    %653 = vmatpush1.bf16.msra.mxu0 %v609
    %654 = vmatprep.subr.bf16.mxu0 0
    %655 = vmatpush1.bf16.msra.mxu0 %v608
    %656 = vmatprep.subr.bf16.mxu0 0
    %657 = vmatpush2.bf16.msra.mxu0 %v623
    %658 = vmatprep.subr.bf16.mxu0 0
    %659 = vmatpush2.bf16.msra.mxu0 %v622
    %660 = vmatprep.subr.bf16.mxu0 0
    %661 = vmatpush2.bf16.msra.mxu0 %v621
    %662 = vmatprep.subr.bf16.mxu0 0
    %663 = vmatpush2.bf16.msra.mxu0 %v620
    %664 = vmatprep.subr.bf16.mxu0 0
    %665 = vmatpush2.bf16.msra.mxu0 %v619
    %666 = vmatprep.subr.bf16.mxu0 0
    %667 = vmatpush2.bf16.msra.mxu0 %v618
    %668 = vmatprep.subr.bf16.mxu0 0
    %669 = vmatpush2.bf16.msra.mxu0 %v617
    %670 = vmatprep.subr.bf16.mxu0 0
    %671 = vmatpush2.bf16.msra.mxu0 %v616
    %672 = vmatprep.mubr.bf16.mxu0 %v507
    %673 = vmatmul.mubr.bf16.gmra.mxu0 %v506
    %v674 = vpop.f32.mrf.mxu0
    %v675 = vadd.f32 %v543, %v674
    %v676 = vpop.f32.mrf.mxu0
    %v677 = vpop.f32.mrf.mxu0
    %v678 = vadd.f32 %v543, %v677
    %v679 = vpop.f32.mrf.mxu0
    %680 = vdwg.mxu0
    %v681 = vmul.f32 %v675, 0.1
    %v682 = vmul.f32 %v678, 0.1
    %v683 = vmax.f32 %v675, %v681
    %v684 = vmax.f32 %v678, %v682
    %v685 = vld [vmem:[%s5 + $0x3] sm:$0x1]
    %v686 = vpack.c.bf16 %v684, %v683
    %v687 = vld [vmem:[#allocation10] sm:$0xf]
    %v688 = vld [vmem:[#allocation10 + $0x4] sm:$0xf]
    %v689 = vld [vmem:[#allocation10 + $0x8] sm:$0xf]
    %v690 = vld [vmem:[#allocation10 + $0xc] sm:$0xf]
    %v691 = vld [vmem:[#allocation10 + $0x10] sm:$0xf]
    %v692 = vld [vmem:[#allocation10 + $0x14] sm:$0xf]
    %v693 = vld [vmem:[#allocation10 + $0x18] sm:$0xf]
    %v694 = vld [vmem:[#allocation10 + $0x1c] sm:$0xf]
    %v695 = vld [vmem:[#allocation10 + $0x20] sm:$0xf]
    %v696 = vld [vmem:[#allocation10 + $0x24] sm:$0xf]
    %v697 = vld [vmem:[#allocation10 + $0x28] sm:$0xf]
    %v698 = vld [vmem:[#allocation10 + $0x2c] sm:$0xf]
    %v699 = vld [vmem:[#allocation10 + $0x30] sm:$0xf]
    %v700 = vld [vmem:[#allocation10 + $0x34] sm:$0xf]
    %v701 = vld [vmem:[#allocation10 + $0x38] sm:$0xf]
    %v702 = vld [vmem:[#allocation10 + $0x3c] sm:$0xf]
    %v703 = vlaneseq
    %v704 = vshrl.u32 %v703, 7
    %v705 = vsub.s32 0, %v704
    %v706 = vrot.slane %v685, %v705
    %v723 = vunpack.c.l.b16 %v687
    %v724 = vunpack.c.l.b16 %v688
    %v725 = vunpack.c.l.b16 %v689
    %v726 = vunpack.c.l.b16 %v690
    %v727 = vunpack.c.l.b16 %v691
    %v728 = vunpack.c.l.b16 %v692
    %v729 = vunpack.c.l.b16 %v693
    %v730 = vunpack.c.l.b16 %v694
    %v731 = vunpack.c.l.b16 %v695
    %v732 = vunpack.c.l.b16 %v696
    %v733 = vunpack.c.l.b16 %v697
    %v734 = vunpack.c.l.b16 %v698
    %v735 = vunpack.c.l.b16 %v699
    %v736 = vunpack.c.l.b16 %v700
    %v737 = vunpack.c.l.b16 %v701
    %v738 = vunpack.c.l.b16 %v702
    %v739 = vpack.c.b16 %v724, %v723
    %v740 = vpack.c.b16 %v726, %v725
    %v741 = vpack.c.b16 %v728, %v727
    %v742 = vpack.c.b16 %v730, %v729
    %v743 = vpack.c.b16 %v732, %v731
    %v744 = vpack.c.b16 %v734, %v733
    %v745 = vpack.c.b16 %v736, %v735
    %v746 = vpack.c.b16 %v738, %v737
    %755 = vmatprep.subr.bf16.mxu0 0
    %756 = vmatpush1.bf16.msra.mxu0 %v746
    %757 = vmatprep.subr.bf16.mxu0 0
    %758 = vmatpush1.bf16.msra.mxu0 %v745
    %759 = vmatprep.subr.bf16.mxu0 0
    %760 = vmatpush1.bf16.msra.mxu0 %v744
    %761 = vmatprep.subr.bf16.mxu0 0
    %762 = vmatpush1.bf16.msra.mxu0 %v743
    %763 = vmatprep.subr.bf16.mxu0 0
    %764 = vmatpush1.bf16.msra.mxu0 %v742
    %765 = vmatprep.subr.bf16.mxu0 0
    %766 = vmatpush1.bf16.msra.mxu0 %v741
    %767 = vmatprep.subr.bf16.mxu0 0
    %768 = vmatpush1.bf16.msra.mxu0 %v740
    %769 = vmatprep.subr.bf16.mxu0 0
    %770 = vmatpush1.bf16.msra.mxu0 %v739
    %771 = vmatprep.subr.bf16.mxu0 0
    %772 = vmatpush2.bf16.msra.mxu0 0
    %773 = vmatprep.subr.bf16.mxu0 0
    %774 = vmatpush2.bf16.msra.mxu0 0
    %775 = vmatprep.subr.bf16.mxu0 0
    %776 = vmatpush2.bf16.msra.mxu0 0
    %777 = vmatprep.subr.bf16.mxu0 0
    %778 = vmatpush2.bf16.msra.mxu0 0
    %779 = vmatprep.subr.bf16.mxu0 0
    %780 = vmatpush2.bf16.msra.mxu0 0
    %781 = vmatprep.subr.bf16.mxu0 0
    %782 = vmatpush2.bf16.msra.mxu0 0
    %783 = vmatprep.subr.bf16.mxu0 0
    %784 = vmatpush2.bf16.msra.mxu0 0
    %785 = vmatprep.subr.bf16.mxu0 0
    %786 = vmatpush2.bf16.msra.mxu0 0
    %787 = vmatprep.mubr.bf16.mxu0 0
    %788 = vmatmul.mubr.bf16.gmra.mxu0 %v686
    %v789 = vpop.f32.mrf.mxu0
    %v790 = vadd.f32 %v706, %v789
    %v791 = vpop.f32.mrf.mxu0
    %v792 = vpop.f32.mrf.mxu0
    %v793 = vadd.f32 %v706, %v792
    %v794 = vpop.f32.mrf.mxu0
    %795 = vdwg.mxu0
    %v796 = vmul.f32 %v790, %v790
    %v797 = vmul.f32 %v793, %v793
    %798 = vadd.xlane.f32.xlu0 %v796
    %v799 = vpop.xlane.xlu0 %798
    %800 = vadd.xlane.f32.xlu0 %v797
    %v801 = vpop.xlane.xlu0 %800
    %v802 = vmax.f32 %v799, 1e-24
    %v803 = vmax.f32 %v801, 1e-24
    %v804 = vrsqrt.pop %v802
    %v805 = vrsqrt.pop %v803
    %v806 = vmul.f32 %v790, %v804
    %v807 = vmul.f32 %v793, %v805
    %808 = vst [vmem:[#allocation11] sm:$0xff] %v806
    %809 = vst [vmem:[#allocation11 + $0x8] sm:$0xff] %v807
    // Predicated region
    $region46: #{tpu_custom_call.1} parent=1 // pred_check
      _
    $region47: #{tpu_custom_call.1} parent=1 // pred_check_branch
      %811 = sbr.rel (0) target = $region49
    $region48: #{tpu_custom_call.1} parent=1 // pred_region
      %s813 = ssub.s32 256, 256
      %814 = vsyncadd [#allocation4], %s813
      %s815 = sshll.u32 [#allocation11], 4
      %s816 = int_to_ptr.vmem [resolvable:$true] %s815
      %821 = dma.vmem_to_hbm [thread:$0]  %s816, 256, %s6, [#allocation4], 128, 128, 8
    $region49: #{tpu_custom_call.1} parent=1 // pred_fallthru
      _
    // Predicated region
    $region50: #{tpu_custom_call.1} parent=1 // pred_check
      _
    $region51: #{tpu_custom_call.1} parent=1 // pred_check_branch
      %823 = sbr.rel (0) target = $region53
    $region52: #{tpu_custom_call.1} parent=1 // pred_region
      %824 = dma.done [#allocation4], 256
    $region53: #{tpu_custom_call.1} parent=1 // pred_fallthru
      _
    %825 = vsyncpa [#allocation3], 1
    %826 = vsyncpa [#allocation6], 1
    %827 = vsyncpa [#allocation9], 1
    %828 = vsyncpa [#allocation4], 1

</llo_original>
